<compile_context>
chip_gen: v7x
topology: tpu7x:2x2x1
jax: 0.10.0
libtpu: 0.0.40
codegen_flags: <defaults>
</compile_context>

<pallas_src>
import functools

import jax
import jax.numpy as jnp
from jax.experimental import pallas as pl
from jax.experimental.pallas import tpu as pltpu

GAMMA = 2.0
ALPHA = 0.25           # scalar alpha -> [alpha, 1 - alpha], selected by (target != 0)
SIZE_AVERAGE = True

_LANES = 128
_SUBLANES = 8
_MIN_TILE = _SUBLANES * _LANES   # 1024 columns = one (8,128) vreg tile


def _cdiv(a, b):
    return -(-a // b)


def _round_up(x, m):
    return ((x + m - 1) // m) * m


def _focal_loss_kernel(x_ref, t_ref, out_ref, *, hw, tn, n_j_inner,
                       num_classes, gamma, a0, a1, need_mask):
    """One (C, ts, 128) logits tile + (ts, 128) targets tile -> folded acc.

    x_ref  : (C, ts, 128) logits (any float dtype; upcast to f32 in-kernel)
    t_ref  : (ts, 128)    integer class indices (widened in-kernel)
    out_ref: (rows, 128)  f32 per-(core, batch) partial-sum accumulator,
                          resident across the innermost ("arbitrary") axis.
    """
    p = pl.program_id(0)                  # megacore column split (v7x, B == 1)
    jj = pl.program_id(2)                 # column-tile index within this core
    g = p * n_j_inner + jj                # global column-block index

    t = t_ref[...].astype(jnp.int32)      # (ts, 128)

    # ---- pass 1: class-axis max (unrolled; pure VPU) ----------------------
    m = x_ref[0].astype(jnp.float32)
    for k in range(1, num_classes):
        m = jnp.maximum(m, x_ref[k].astype(jnp.float32))

    # ---- pass 2 (fused): exp-sum + target gather, reusing exp() -----------
    r0 = x_ref[0].astype(jnp.float32)
    e0 = jnp.exp(r0 - m)
    denom = e0
    sel = r0                               # target-class logit
    sel_e = e0                             # exp(target-class logit - m)
    for k in range(1, num_classes):
        rk = x_ref[k].astype(jnp.float32)
        ek = jnp.exp(rk - m)
        denom = denom + ek
        is_k = t == k
        sel = jnp.where(is_k, rk, sel)
        sel_e = jnp.where(is_k, ek, sel_e)

    lse = jnp.log(denom)
    logpt = sel - m - lse                  # gathered log-softmax
    pt = sel_e / denom                     # exact divide; reuses exp, no 2nd exp

    at = jnp.where(t != 0, jnp.float32(a1), jnp.float32(a0))
    u = 1.0 - pt
    focal = u * u if gamma == 2.0 else u ** gamma
    loss = -focal * (logpt * at)           # (ts, 128)

    def fold(v):
        rows = out_ref.shape[0]
        if v.shape[0] == rows:
            return v
        # tile-aligned reshape; sum over sublane groups = a few VPU vreg adds
        return v.reshape(v.shape[0] // rows, rows, v.shape[1]).sum(axis=0)

    def accumulate(v):
        @pl.when(jj == 0)
        def _():
            out_ref[...] = v

        @pl.when(jj != 0)
        def _():
            out_ref[...] += v

    if need_mask:
        full_blocks = hw // tn             # blocks with no invalid columns

        @pl.when(g < full_blocks)          # interior tiles: no mask work
        def _():
            accumulate(fold(loss))

        @pl.when(g >= full_blocks)         # ragged / padded / OOB tail only
        def _():
            sub = jax.lax.broadcasted_iota(jnp.int32, loss.shape, 0)
            lane = jax.lax.broadcasted_iota(jnp.int32, loss.shape, 1)
            pos = g * tn + sub * _LANES + lane
            accumulate(fold(jnp.where(pos < hw, loss, 0.0)))
    else:
        accumulate(fold(loss))


def focal_loss(logits_nchw, target_nhw, *, gamma=GAMMA, alpha=ALPHA,
               size_average=SIZE_AVERAGE, tile_cols=65536):
    """Focal loss matching the PyTorch FocalLoss.forward semantics.

    logits_nchw: (B, C, H, W) float logits (f32 or bf16 — no wrapper cast).
    target_nhw:  (B, H, W) integer class indices in [0, C) (any int dtype).
    Returns a scalar float32.
    """
    B, C, H, W = logits_nchw.shape
    hw = H * W
    n = B * hw

    x = logits_nchw.reshape(B, C, hw)      # free reshapes, native NCHW order
    t = target_nhw.reshape(B, hw)
    if not jnp.issubdtype(t.dtype, jnp.integer):
        t = t.astype(jnp.int32)

    # Minimal pad only when hw is not a lane multiple (rare); the ragged tail
    # past hw is masked in-kernel — no padded full-array copy in the common case.
    hw128 = _round_up(hw, _LANES)
    if hw128 != hw:
        x = jnp.pad(x, ((0, 0), (0, 0), (0, hw128 - hw)))
        t = jnp.pad(t, ((0, 0), (0, hw128 - hw)))
    n128 = hw128 // _LANES
    x = x.reshape(B, C, n128, _LANES)
    t = t.reshape(B, n128, _LANES)

    # ---- tile size: amortize per-step overhead, fit the VMEM budget -------
    x_item = jnp.dtype(x.dtype).itemsize
    t_item = jnp.dtype(t.dtype).itemsize
    try:
        vmem_cap = int(pltpu.get_tpu_info().vmem_capacity_bytes)   # 64 MiB on v7x
    except Exception:
        vmem_cap = 64 << 20                                        # conservative
    vmem_limit = int(min(32 << 20, vmem_cap // 2))                 # safe everywhere
    budget = int(vmem_limit * 0.7)
    # per-column bytes: double-buffered logits + double-buffered targets
    # + ~14 whole-tile f32 temporaries live inside the kernel body.
    bytes_per_col = 2 * C * x_item + 2 * t_item + 14 * 4
    tn_cap = max(_MIN_TILE, (budget // bytes_per_col) // _MIN_TILE * _MIN_TILE)
    tile_cols = min(int(tile_cols), tn_cap)

    # Sublane rows per tile: multiple of 8 (or the full extent when n128 < 8),
    # distributing column blocks as evenly as possible (minimal wasted tail).
    if n128 < _SUBLANES:
        ts = n128                          # full-extent block (allowed)
    else:
        max_ts = max(_SUBLANES, tile_cols // _LANES // _SUBLANES * _SUBLANES)
        ts = _round_up(_cdiv(n128, _cdiv(n128, max_ts)), _SUBLANES)
        ts = min(ts, max_ts, (n128 // _SUBLANES) * _SUBLANES)
    tn = ts * _LANES
    n_j = _cdiv(n128, ts)                  # total column blocks

    # v7x megacore: with a single batch the "parallel" B axis leaves the 2nd
    # TensorCore idle — split column blocks across a leading parallel axis.
    P = 2 if (B == 1 and n_j >= 2 and n_j % 2 == 0) else 1
    n_j_inner = n_j // P

    need_mask = (n_j * tn) != hw           # ragged / padded tail exists
    rows = ts if ts < _SUBLANES else _SUBLANES   # folded accumulator rows

    kernel = functools.partial(
        _focal_loss_kernel, hw=hw, tn=tn, n_j_inner=n_j_inner, num_classes=C,
        gamma=float(gamma), a0=float(alpha), a1=1.0 - float(alpha),
        need_mask=bool(need_mask))

    partial_sums = pl.pallas_call(
        kernel,
        out_shape=jax.ShapeDtypeStruct((P, B, rows, _LANES), jnp.float32),
        grid_spec=pltpu.PrefetchScalarGridSpec(
            num_scalar_prefetch=0,
            grid=(P, B, n_j_inner),
            in_specs=[
                # logits: (C, ts, 128) per step; batch squeezed
                pl.BlockSpec((None, C, ts, _LANES),
                             lambda p, b, jj: (b, 0, p * n_j_inner + jj, 0)),
                # targets: (ts, 128) per step
                pl.BlockSpec((None, ts, _LANES),
                             lambda p, b, jj: (b, p * n_j_inner + jj, 0)),
            ],
            # per-(core, batch) folded accumulator, resident across jj
            out_specs=pl.BlockSpec((None, None, rows, _LANES),
                                   lambda p, b, jj: (p, b, 0, 0)),
        ),
        compiler_params=pltpu.CompilerParams(
            dimension_semantics=("parallel", "parallel", "arbitrary"),
            vmem_limit_bytes=vmem_limit),
    )(x, t)

    loss_sum = jnp.sum(partial_sums)
    if size_average:
        return loss_sum / jnp.float32(n)
    return loss_sum


def _focal_loss_ref(logits_nchw, target_nhw, gamma=GAMMA, alpha=ALPHA,
                    size_average=SIZE_AVERAGE):
    B, C, H, W = logits_nchw.shape
    x = jnp.transpose(logits_nchw.reshape(B, C, H * W), (0, 2, 1)).reshape(-1, C)
    t = target_nhw.reshape(-1).astype(jnp.int32)
    logp = jax.nn.log_softmax(x.astype(jnp.float32), axis=-1)
    logpt = jnp.take_along_axis(logp, t[:, None], axis=1)[:, 0]
    pt = jnp.exp(logpt)
    at = jnp.where(t != 0, 1.0 - alpha, alpha)
    loss = -1.0 * (1.0 - pt) ** gamma * (logpt * at)
    return loss.mean() if size_average else loss.sum()


if __name__ == "__main__":
    key = jax.random.PRNGKey(0)
    k1, k2 = jax.random.split(key)
    B, C, H, W = 2, 4, 16, 16
    logits = jax.random.normal(k1, (B, C, H, W), dtype=jnp.float32)
    target = jax.random.randint(k2, (B, H, W), 0, C, dtype=jnp.int32)

    out = focal_loss(logits, target)
    out = jax.block_until_ready(out)

    ref = _focal_loss_ref(logits, target)
    assert jnp.allclose(out, ref, rtol=1e-5, atol=1e-6), (out, ref)
    print("KERNEL_OK")
</pallas_src>

<mosaic_0001>
module attributes {stable_mosaic.version = 11 : i64} {
  func.func @_focal_loss_kernel(%arg0: i32, %arg1: i32, %arg2: i32, %arg3: memref<1x4x2x128xf32, #tpu.memory_space<vmem>>, %arg4: memref<1x2x128xi32, #tpu.memory_space<vmem>>, %arg5: memref<1x1x2x128xf32, #tpu.memory_space<vmem>>) attributes {dimension_semantics = [#tpu.dimension_semantics<parallel>, #tpu.dimension_semantics<parallel>, #tpu.dimension_semantics<arbitrary>], iteration_bounds = array<i64: 1, 2, 1>, scalar_prefetch = 0 : i64, scratch_operands = 0 : i64, tpu.core_type = #tpu.core_type<tc>, window_params = [{transform_indices = @transform_0, window_bounds = array<i64: 1, 4, 2, 128>}, {transform_indices = @transform_1, window_bounds = array<i64: 1, 2, 128>}, {transform_indices = @transform_2, window_bounds = array<i64: 1, 1, 2, 128>}]} {
    %c0 = arith.constant 0 : index
    %c0_0 = arith.constant 0 : index
    %c0_1 = arith.constant 0 : index
    %0 = vector.load %arg4[%c0, %c0_0, %c0_1] : memref<1x2x128xi32, #tpu.memory_space<vmem>>, vector<1x2x128xi32>
    %1 = vector.shape_cast %0 : vector<1x2x128xi32> to vector<2x128xi32>
    %c0_2 = arith.constant 0 : index
    %c0_3 = arith.constant 0 : index
    %c0_4 = arith.constant 0 : index
    %c0_5 = arith.constant 0 : index
    %2 = vector.load %arg3[%c0_2, %c0_3, %c0_4, %c0_5] : memref<1x4x2x128xf32, #tpu.memory_space<vmem>>, vector<1x1x2x128xf32>
    %3 = vector.shape_cast %2 : vector<1x1x2x128xf32> to vector<2x128xf32>
    %c0_6 = arith.constant 0 : index
    %c1 = arith.constant 1 : index
    %c0_7 = arith.constant 0 : index
    %c0_8 = arith.constant 0 : index
    %4 = vector.load %arg3[%c0_6, %c1, %c0_7, %c0_8] : memref<1x4x2x128xf32, #tpu.memory_space<vmem>>, vector<1x1x2x128xf32>
    %5 = vector.shape_cast %4 : vector<1x1x2x128xf32> to vector<2x128xf32>
    %6 = arith.maximumf %3, %5 : vector<2x128xf32>
    %c0_9 = arith.constant 0 : index
    %c2 = arith.constant 2 : index
    %c0_10 = arith.constant 0 : index
    %c0_11 = arith.constant 0 : index
    %7 = vector.load %arg3[%c0_9, %c2, %c0_10, %c0_11] : memref<1x4x2x128xf32, #tpu.memory_space<vmem>>, vector<1x1x2x128xf32>
    %8 = vector.shape_cast %7 : vector<1x1x2x128xf32> to vector<2x128xf32>
    %9 = arith.maximumf %6, %8 : vector<2x128xf32>
    %c0_12 = arith.constant 0 : index
    %c3 = arith.constant 3 : index
    %c0_13 = arith.constant 0 : index
    %c0_14 = arith.constant 0 : index
    %10 = vector.load %arg3[%c0_12, %c3, %c0_13, %c0_14] : memref<1x4x2x128xf32, #tpu.memory_space<vmem>>, vector<1x1x2x128xf32>
    %11 = vector.shape_cast %10 : vector<1x1x2x128xf32> to vector<2x128xf32>
    %12 = arith.maximumf %9, %11 : vector<2x128xf32>
    %c0_15 = arith.constant 0 : index
    %c0_16 = arith.constant 0 : index
    %c0_17 = arith.constant 0 : index
    %c0_18 = arith.constant 0 : index
    %13 = vector.load %arg3[%c0_15, %c0_16, %c0_17, %c0_18] : memref<1x4x2x128xf32, #tpu.memory_space<vmem>>, vector<1x1x2x128xf32>
    %14 = vector.shape_cast %13 : vector<1x1x2x128xf32> to vector<2x128xf32>
    %15 = arith.subf %14, %12 : vector<2x128xf32>
    %16 = math.exp %15 : vector<2x128xf32>
    %c0_19 = arith.constant 0 : index
    %c1_20 = arith.constant 1 : index
    %c0_21 = arith.constant 0 : index
    %c0_22 = arith.constant 0 : index
    %17 = vector.load %arg3[%c0_19, %c1_20, %c0_21, %c0_22] : memref<1x4x2x128xf32, #tpu.memory_space<vmem>>, vector<1x1x2x128xf32>
    %18 = vector.shape_cast %17 : vector<1x1x2x128xf32> to vector<2x128xf32>
    %19 = arith.subf %18, %12 : vector<2x128xf32>
    %20 = math.exp %19 : vector<2x128xf32>
    %21 = arith.addf %16, %20 : vector<2x128xf32>
    %c1_i32 = arith.constant 1 : i32
    %22 = vector.broadcast %c1_i32 : i32 to vector<2x128xi32>
    %23 = arith.cmpi eq, %1, %22 : vector<2x128xi32>
    %24 = arith.select %23, %18, %14 : vector<2x128xi1>, vector<2x128xf32>
    %25 = arith.select %23, %20, %16 : vector<2x128xi1>, vector<2x128xf32>
    %c0_23 = arith.constant 0 : index
    %c2_24 = arith.constant 2 : index
    %c0_25 = arith.constant 0 : index
    %c0_26 = arith.constant 0 : index
    %26 = vector.load %arg3[%c0_23, %c2_24, %c0_25, %c0_26] : memref<1x4x2x128xf32, #tpu.memory_space<vmem>>, vector<1x1x2x128xf32>
    %27 = vector.shape_cast %26 : vector<1x1x2x128xf32> to vector<2x128xf32>
    %28 = arith.subf %27, %12 : vector<2x128xf32>
    %29 = math.exp %28 : vector<2x128xf32>
    %30 = arith.addf %21, %29 : vector<2x128xf32>
    %c2_i32 = arith.constant 2 : i32
    %31 = vector.broadcast %c2_i32 : i32 to vector<2x128xi32>
    %32 = arith.cmpi eq, %1, %31 : vector<2x128xi32>
    %33 = arith.select %32, %27, %24 : vector<2x128xi1>, vector<2x128xf32>
    %34 = arith.select %32, %29, %25 : vector<2x128xi1>, vector<2x128xf32>
    %c0_27 = arith.constant 0 : index
    %c3_28 = arith.constant 3 : index
    %c0_29 = arith.constant 0 : index
    %c0_30 = arith.constant 0 : index
    %35 = vector.load %arg3[%c0_27, %c3_28, %c0_29, %c0_30] : memref<1x4x2x128xf32, #tpu.memory_space<vmem>>, vector<1x1x2x128xf32>
    %36 = vector.shape_cast %35 : vector<1x1x2x128xf32> to vector<2x128xf32>
    %37 = arith.subf %36, %12 : vector<2x128xf32>
    %38 = math.exp %37 : vector<2x128xf32>
    %39 = arith.addf %30, %38 : vector<2x128xf32>
    %c3_i32 = arith.constant 3 : i32
    %40 = vector.broadcast %c3_i32 : i32 to vector<2x128xi32>
    %41 = arith.cmpi eq, %1, %40 : vector<2x128xi32>
    %42 = arith.select %41, %36, %33 : vector<2x128xi1>, vector<2x128xf32>
    %43 = arith.select %41, %38, %34 : vector<2x128xi1>, vector<2x128xf32>
    %44 = math.log %39 : vector<2x128xf32>
    %45 = arith.subf %42, %12 : vector<2x128xf32>
    %46 = arith.subf %45, %44 : vector<2x128xf32>
    %47 = arith.divf %43, %39 : vector<2x128xf32>
    %c0_i32 = arith.constant 0 : i32
    %48 = vector.broadcast %c0_i32 : i32 to vector<2x128xi32>
    %49 = arith.cmpi ne, %1, %48 : vector<2x128xi32>
    %cst = arith.constant 7.500000e-01 : f32
    %cst_31 = arith.constant 2.500000e-01 : f32
    %50 = vector.broadcast %cst : f32 to vector<2x128xf32>
    %51 = vector.broadcast %cst_31 : f32 to vector<2x128xf32>
    %52 = arith.select %49, %50, %51 : vector<2x128xi1>, vector<2x128xf32>
    %cst_32 = arith.constant 1.000000e+00 : f32
    %53 = vector.broadcast %cst_32 : f32 to vector<2x128xf32>
    %54 = arith.subf %53, %47 : vector<2x128xf32>
    %55 = arith.mulf %54, %54 : vector<2x128xf32>
    %cst_33 = arith.constant 0.000000e+00 : f32
    %56 = vector.broadcast %cst_33 : f32 to vector<2x128xf32>
    %57 = arith.subf %56, %55 : vector<2x128xf32>
    %58 = arith.mulf %46, %52 : vector<2x128xf32>
    %59 = arith.mulf %57, %58 : vector<2x128xf32>
    %c0_i32_34 = arith.constant 0 : i32
    %60 = arith.cmpi eq, %arg2, %c0_i32_34 : i32
    %61 = arith.extui %60 : i1 to i32
    %c0_i32_35 = arith.constant 0 : i32
    %62 = arith.cmpi ne, %61, %c0_i32_35 : i32
    scf.if %62 {
      %c0_38 = arith.constant 0 : index
      %c0_39 = arith.constant 0 : index
      %c0_40 = arith.constant 0 : index
      %c0_41 = arith.constant 0 : index
      %66 = vector.load %arg5[%c0_38, %c0_39, %c0_40, %c0_41] : memref<1x1x2x128xf32, #tpu.memory_space<vmem>>, vector<1x1x2x128xf32>
      %67 = vector.shape_cast %66 : vector<1x1x2x128xf32> to vector<2x128xf32>
      %68 = vector.shape_cast %59 : vector<2x128xf32> to vector<1x1x2x128xf32>
      tpu.vector_store %arg5[%c0_38, %c0_39, %c0_40, %c0_41], %68 {strides = array<i32>} : memref<1x1x2x128xf32, #tpu.memory_space<vmem>>, vector<1x1x2x128xf32>,
    } else {
    }
    %c0_i32_36 = arith.constant 0 : i32
    %63 = arith.cmpi ne, %arg2, %c0_i32_36 : i32
    %64 = arith.extui %63 : i1 to i32
    %c0_i32_37 = arith.constant 0 : i32
    %65 = arith.cmpi ne, %64, %c0_i32_37 : i32
    scf.if %65 {
      %c0_38 = arith.constant 0 : index
      %c0_39 = arith.constant 0 : index
      %c0_40 = arith.constant 0 : index
      %c0_41 = arith.constant 0 : index
      %66 = vector.load %arg5[%c0_38, %c0_39, %c0_40, %c0_41] : memref<1x1x2x128xf32, #tpu.memory_space<vmem>>, vector<1x1x2x128xf32>
      %67 = vector.shape_cast %66 : vector<1x1x2x128xf32> to vector<2x128xf32>
      %68 = arith.addf %67, %59 : vector<2x128xf32>
      %c0_42 = arith.constant 0 : index
      %c0_43 = arith.constant 0 : index
      %c0_44 = arith.constant 0 : index
      %c0_45 = arith.constant 0 : index
      %69 = vector.load %arg5[%c0_42, %c0_43, %c0_44, %c0_45] : memref<1x1x2x128xf32, #tpu.memory_space<vmem>>, vector<1x1x2x128xf32>
      %70 = vector.shape_cast %69 : vector<1x1x2x128xf32> to vector<2x128xf32>
      %71 = vector.shape_cast %68 : vector<2x128xf32> to vector<1x1x2x128xf32>
      tpu.vector_store %arg5[%c0_42, %c0_43, %c0_44, %c0_45], %71 {strides = array<i32>} : memref<1x1x2x128xf32, #tpu.memory_space<vmem>>, vector<1x1x2x128xf32>,
    } else {
    }
    return
  }
  func.func @transform_0(%arg0: i32, %arg1: i32, %arg2: i32) -> (i32, i32, i32, i32) {
    %c1_i32 = arith.constant 1 : i32
    %0 = arith.muli %arg0, %c1_i32 : i32
    %1 = arith.addi %0, %arg2 : i32
    %c0_i32 = arith.constant 0 : i32
    %c0_i32_0 = arith.constant 0 : i32
    %c0_i32_1 = arith.constant 0 : i32
    return %arg1, %c0_i32, %1, %c0_i32_0 : i32, i32, i32, i32
  }
  func.func @transform_1(%arg0: i32, %arg1: i32, %arg2: i32) -> (i32, i32, i32) {
    %c1_i32 = arith.constant 1 : i32
    %0 = arith.muli %arg0, %c1_i32 : i32
    %1 = arith.addi %0, %arg2 : i32
    %c0_i32 = arith.constant 0 : i32
    %c0_i32_0 = arith.constant 0 : i32
    return %arg1, %1, %c0_i32 : i32, i32, i32
  }
  func.func @transform_2(%arg0: i32, %arg1: i32, %arg2: i32) -> (i32, i32, i32, i32) {
    %c0_i32 = arith.constant 0 : i32
    %c0_i32_0 = arith.constant 0 : i32
    %c0_i32_1 = arith.constant 0 : i32
    return %arg0, %arg1, %c0_i32, %c0_i32_0 : i32, i32, i32, i32
  }
}

</mosaic_0001>

<llo_original>
// kernel: tpu_custom_call.1
$region0: #{tpu_custom_call.1}
  #allocation0 [shape = 'u32[]', space=smem, size = 0x4, offset = 0x4, fixed_abs, tag = 'smem constant byte address 0x4 - core index']
  #allocation1 [shape = 'u32[144,128]{1,0:T(1,128)}', space=vmem, size = 0x12000, scoped, tag = 'internal scratch']
  %s0 = inlined_call_operand.hbm [shape: f32[2,4,2,128], index: 0, kind: input, shape index: {}]
  %s1 = inlined_call_operand.hbm [shape: s32[2,2,128], index: 1, kind: input, shape index: {}]
  %s2 = inlined_call_operand.hbm [shape: f32[1,2,2,128], index: 2, kind: output, shape index: {}]
  %s3 = sld [smem:[#allocation0]]
  $region57: #{tpu_custom_call.1} parent=0
    _
  %s5 = ssub.s32 1, %s3
  %s6 = scalar_select 0, %s5, %s3
  $region1: #{tpu_custom_call.1} parent=0
    #allocation2 [shape = 'u8[8192]{0}', space=vmem, size = 0x2000, scoped, tag = 'input window, operand 0']
    #allocation3 [shape = 's32[2]{0}', space=sflag, size = 0x8, scoped, tag = 'scoped memory for tpu_custom_call.1']
    #allocation4 [shape = 's32[2]{0}', space=sflag, size = 0x8, scoped, tag = 'scoped memory for tpu_custom_call.1']
    #allocation5 [shape = 'u8[2048]{0}', space=vmem, size = 0x800, scoped, tag = 'input window, operand 1']
    #allocation6 [shape = 's32[2]{0}', space=sflag, size = 0x8, scoped, tag = 'scoped memory for tpu_custom_call.1']
    #allocation7 [shape = 'u8[2048]{0}', space=vmem, size = 0x800, scoped, tag = 'output window, operand 0']
    %7 = vsyncpa [#allocation3], 0
    %s8 = scalar_lea.sflag [#allocation3], 1
    %9 = vsyncpa %s8, 0
    %10 = vsyncpa [#allocation6], 0
    %s11 = scalar_lea.sflag [#allocation6], 1
    %12 = vsyncpa %s11, 0
    %13 = vsyncpa [#allocation4], 0
    %s14 = scalar_lea.sflag [#allocation4], 1
    %15 = vsyncpa %s14, 0
    loop: start=0, step=1, limit=4
    $region2: #{tpu_custom_call.1} parent=1 // loop_pre_header
      _
    $region3: #{tpu_custom_call.1} parent=1 // loop_header
      %s17 = sphi 0, %s21
      %p18 = scmp.ge.s32.totalorder %s17, 4
      %s24 = sphi 0, %s43
      %s25 = sphi 0, %s39
      %s26 = sphi 0, %s35
      %s27 = sphi 0, %s24
      %s28 = sphi 0, %s25
      %s29 = sphi 0, %s26
      %s30 = sphi 0, %s27
      %s31 = sphi 0, %s28
      %s32 = sphi 0, %s29
      %s50 = sphi 0, %s52
      %s53 = sphi 0, %s50
      %s54 = sphi 0, %s53
      %s70 = sphi 0, %s54
      %s80 = sphi 0, %s82
      %s83 = sphi 0, %s80
      %s84 = sphi 0, %s83
      %s100 = sphi 0, %s84
      %s108 = sphi 0, %s110
      %s111 = sphi 0, %s108
      %s112 = sphi 0, %s111
      %s128 = sphi 0, %s112
    $region4: #{tpu_custom_call.1} parent=1 // loop_header_branch
      %20 = sbr.rel (%p18) target = $region8
    $region5: #{tpu_custom_call.1} parent=1 // loop_body
      %s22 = ssub.s32 %s17, 1
      %s23 = ssub.s32 %s17, 2
      %s33 = sadd.s32 1, %s26
      %p34 = scmp.ge.s32.totalorder %s33, 1
      %s35 = scalar_select %p34, 0, %s33
      %s36 = sadd.s32 1, %s25
      %s37 = scalar_select %p34, %s36, %s25
      %p38 = scmp.ge.s32.totalorder %s37, 2
      %s39 = scalar_select %p38, 0, %s37
      %s40 = sadd.s32 1, %s24
      %s41 = scalar_select %p38, %s40, %s24
      %p42 = scmp.ge.s32.totalorder %s41, 1
      %s43 = scalar_select %p42, 0, %s41
      %s44 = sadd.s32 %s24, %s26
      %s45 = sadd.s32 %s43, %s35
      %s46 = ssub.s32 %s25, %s39
      %s47 = ssub.s32 %s44, %s45
      %s48 = sor.u32 %s46, %s47
      %p49 = scmp.eq.s32.totalorder %s48, 0
      %s51 = sadd.s32 %s50, 1
      %s52 = scalar_select %p49, %s50, %s51
      %p55 = pneg %p49
      %p56 = scmp.eq.s32.totalorder %s17, 1
      %p57 = por %p55, %p56
      %p58 = scmp.ne.s32.totalorder %s50, %s53
      %p59 = scmp.eq.s32.totalorder %s17, 0
      %p60 = por %p58, %p59
      %p61 = scmp.ne.s32.totalorder %s50, %s53
      %p62 = scmp.eq.s32.totalorder %s22, 1
      %p63 = por %p61, %p62
      %p64 = scmp.ne.s32.totalorder %s53, %s54
      %p65 = scmp.eq.s32.totalorder %s22, 0
      %p66 = por %p64, %p65
      %p67 = scmp.ne.s32.totalorder %s53, %s54
      %p68 = scmp.eq.s32.totalorder %s23, 1
      %p69 = por %p67, %p68
      %p71 = scmp.ne.s32.totalorder %s54, %s70
      %p72 = scmp.eq.s32.totalorder %s23, 0
      %p73 = por %p71, %p72
      %s74 = sadd.s32 %s24, %s26
      %s75 = sadd.s32 %s43, %s35
      %s76 = ssub.s32 %s25, %s39
      %s77 = ssub.s32 %s74, %s75
      %s78 = sor.u32 %s76, %s77
      %p79 = scmp.eq.s32.totalorder %s78, 0
      %s81 = sadd.s32 %s80, 1
      %s82 = scalar_select %p79, %s80, %s81
      %p85 = pneg %p79
      %p86 = scmp.eq.s32.totalorder %s17, 1
      %p87 = por %p85, %p86
      %p88 = scmp.ne.s32.totalorder %s80, %s83
      %p89 = scmp.eq.s32.totalorder %s17, 0
      %p90 = por %p88, %p89
      %p91 = scmp.ne.s32.totalorder %s80, %s83
      %p92 = scmp.eq.s32.totalorder %s22, 1
      %p93 = por %p91, %p92
      %p94 = scmp.ne.s32.totalorder %s83, %s84
      %p95 = scmp.eq.s32.totalorder %s22, 0
      %p96 = por %p94, %p95
      %p97 = scmp.ne.s32.totalorder %s83, %s84
      %p98 = scmp.eq.s32.totalorder %s23, 1
      %p99 = por %p97, %p98
      %p101 = scmp.ne.s32.totalorder %s84, %s100
      %p102 = scmp.eq.s32.totalorder %s23, 0
      %p103 = por %p101, %p102
      %s104 = ssub.s32 %s24, %s43
      %s105 = ssub.s32 %s25, %s39
      %s106 = sor.u32 %s104, %s105
      %p107 = scmp.eq.s32.totalorder %s106, 0
      %s109 = sadd.s32 %s108, 1
      %s110 = scalar_select %p107, %s108, %s109
      %p113 = pneg %p107
      %p114 = scmp.eq.s32.totalorder %s17, 1
      %p115 = por %p113, %p114
      %p116 = scmp.ne.s32.totalorder %s108, %s111
      %p117 = scmp.eq.s32.totalorder %s17, 0
      %p118 = por %p116, %p117
      %p119 = scmp.ne.s32.totalorder %s108, %s111
      %p120 = scmp.eq.s32.totalorder %s22, 1
      %p121 = por %p119, %p120
      %p122 = scmp.ne.s32.totalorder %s111, %s112
      %p123 = scmp.eq.s32.totalorder %s22, 0
      %p124 = por %p122, %p123
      %p125 = scmp.ne.s32.totalorder %s111, %s112
      %p126 = scmp.eq.s32.totalorder %s23, 1
      %p127 = por %p125, %p126
      %p129 = scmp.ne.s32.totalorder %s112, %s128
      %p130 = scmp.eq.s32.totalorder %s23, 0
      %p131 = por %p129, %p130
      %p132 = scmp.le.s32.totalorder 1, %s17
      %p133 = scmp.lt.s32.totalorder %s17, 3
      %p134 = pnand %p132, %p133
      %p135 = pneg %p134
      // Predicated region
      $region9: #{tpu_custom_call.1} parent=5 // pred_check
        _
      $region10: #{tpu_custom_call.1} parent=5 // pred_check_branch
        %137 = sbr.rel (%p134) target = $region12
      $region11: #{tpu_custom_call.1} parent=5 // pred_region
        %s138 = ssub.s32 %s17, 1
      $region12: #{tpu_custom_call.1} parent=5 // pred_fallthru
        _
      %p139 = scmp.lt.s32.totalorder %s17, 2
      // Predicated region
      $region13: #{tpu_custom_call.1} parent=5 // pred_check
        %p140 = pneg %p139
      $region14: #{tpu_custom_call.1} parent=5 // pred_check_branch
        %142 = sbr.rel (%p140) target = $region16
      $region15: #{tpu_custom_call.1} parent=5 // pred_region
        // Predicated region
        $region17: #{tpu_custom_call.1} parent=15 // pred_check
          %p143 = pneg %p60
        $region18: #{tpu_custom_call.1} parent=15 // pred_check_branch
          %145 = sbr.rel (%p143) target = $region20
        $region19: #{tpu_custom_call.1} parent=15 // pred_region
          %s146 = sand.u32 %s50, 1
          %s147 = scalar_lea.sflag [#allocation3], %s146
          %s148 = sand.u32 %s50, 1
          %s149 = smul.addr %s148, 8
          %s150 = scalar_lea.vmem [#allocation2], %s149
          %s151 = sadd.s32 %s24, %s26
          %s153 = ssub.s32 128, 128
          %154 = vsyncadd %s147, %s153
          %s155 = smul.addr %s25, 4
          %s156 = sadd.s32 %s151, %s155
          %s157 = smul.addr %s156, 32
          %s158 = scalar_lea.hbm %s0, %s157
          %s159 = sshll.u32 %s150, 4
          %s160 = int_to_ptr.vmem [resolvable:$true] %s159
          %165 = dma.hbm_to_vmem [thread:$0]  %s158, 128, %s160, %s147, 32, 32, 2
        $region20: #{tpu_custom_call.1} parent=15 // pred_fallthru
          _
        // Predicated region
        $region21: #{tpu_custom_call.1} parent=15 // pred_check
          %p166 = pneg %p90
        $region22: #{tpu_custom_call.1} parent=15 // pred_check_branch
          %168 = sbr.rel (%p166) target = $region24
        $region23: #{tpu_custom_call.1} parent=15 // pred_region
          %s169 = sand.u32 %s80, 1
          %s170 = scalar_lea.sflag [#allocation6], %s169
          %s171 = sand.u32 %s80, 1
          %s172 = smul.addr %s171, 2
          %s173 = scalar_lea.vmem [#allocation5], %s172
          %s174 = sadd.s32 %s24, %s26
          %s176 = ssub.s32 32, 32
          %177 = vsyncadd %s170, %s176
          %s178 = sadd.s32 %s174, %s25
          %s179 = smul.addr %s178, 32
          %s180 = scalar_lea.hbm %s1, %s179
          %s182 = sshll.u32 %s173, 4
          %s183 = int_to_ptr.vmem [resolvable:$true] %s182
          %185 = dma.hbm_to_vmem [thread:$0]  %s180, 32, %s183, %s170
        $region24: #{tpu_custom_call.1} parent=15 // pred_fallthru
          _
      $region16: #{tpu_custom_call.1} parent=5 // pred_fallthru
        _
      %p186 = scmp.le.s32.totalorder 1, %s17
      %p187 = scmp.lt.s32.totalorder %s17, 3
      %p188 = pnand %p186, %p187
      %p189 = pneg %p188
      // Predicated region
      $region25: #{tpu_custom_call.1} parent=5 // pred_check
        _
      $region26: #{tpu_custom_call.1} parent=5 // pred_check_branch
        %191 = sbr.rel (%p188) target = $region28
      $region27: #{tpu_custom_call.1} parent=5 // pred_region
        %s192 = ssub.s32 %s17, 1
        %s193 = sand.u32 %s53, 1
        %s194 = scalar_lea.sflag [#allocation3], %s193
        %s195 = sand.u32 %s53, 1
        %s196 = smul.addr %s195, 8
        %s197 = scalar_lea.vmem [#allocation2], %s196
        // Predicated region
        $region29: #{tpu_custom_call.1} parent=27 // pred_check
          %p198 = pneg %p66
        $region30: #{tpu_custom_call.1} parent=27 // pred_check_branch
          %200 = sbr.rel (%p198) target = $region32
        $region31: #{tpu_custom_call.1} parent=27 // pred_region
          %201 = dma.done %s194, 128
        $region32: #{tpu_custom_call.1} parent=27 // pred_fallthru
          _
        %s202 = sand.u32 %s83, 1
        %s203 = scalar_lea.sflag [#allocation6], %s202
        %s204 = sand.u32 %s83, 1
        %s205 = smul.addr %s204, 2
        %s206 = scalar_lea.vmem [#allocation5], %s205
        // Predicated region
        $region33: #{tpu_custom_call.1} parent=27 // pred_check
          %p207 = pneg %p96
        $region34: #{tpu_custom_call.1} parent=27 // pred_check_branch
          %209 = sbr.rel (%p207) target = $region36
        $region35: #{tpu_custom_call.1} parent=27 // pred_region
          %210 = dma.done %s203, 32
        $region36: #{tpu_custom_call.1} parent=27 // pred_fallthru
          _
        %s211 = sand.u32 %s53, 1
        %s212 = scalar_lea.sflag [#allocation3], %s211
        %s213 = sand.u32 %s53, 1
        %s214 = smul.addr %s213, 8
        %s215 = scalar_lea.vmem [#allocation2], %s214
        %p216 = pneg %p66
        %p217 = pneg %p63
        %s218 = sand.u32 %s83, 1
        %s219 = scalar_lea.sflag [#allocation6], %s218
        %s220 = sand.u32 %s83, 1
        %s221 = smul.addr %s220, 2
        %s222 = scalar_lea.vmem [#allocation5], %s221
        %p223 = pneg %p96
        %p224 = pneg %p93
        %p225 = pneg %p124
        %p226 = pneg %p121
        %s227 = sand.u32 %s111, 1
        %s228 = scalar_lea.sflag [#allocation4], %s227
        %s229 = sand.u32 %s111, 1
        %s230 = smul.addr %s229, 2
        %s231 = scalar_lea.vmem [#allocation7], %s230
        %s232 = sadd.s32 %s27, %s29
        %s233 = sadd.s32 %s27, %s29
        %v234 = vld [vmem:[%s206] sm:$0x3]
        %v235 = vld [vmem:[%s197] sm:$0x3]
        %s236 = scalar_lea.vmem %s197, 2 [#allocation2]
        %v237 = vld [vmem:[%s236] sm:$0x3]
        %v238 = vmax.f32 %v235, %v237
        %s239 = scalar_lea.vmem %s197, 4 [#allocation2]
        %v240 = vld [vmem:[%s239] sm:$0x3]
        %v241 = vmax.f32 %v238, %v240
        %s242 = scalar_lea.vmem %s197, 6 [#allocation2]
        %v243 = vld [vmem:[%s242] sm:$0x3]
        %v244 = vmax.f32 %v241, %v243
        %v245 = vsub.f32 %v235, %v244
        %v246 = vmul.f32 %v245, 1.442695
        %v247 = vpow.pop %v246
        %v248 = vsub.f32 %v237, %v244
        %v249 = vmul.f32 %v248, 1.442695
        %v250 = vpow.pop %v249
        %v251 = vadd.f32 %v247, %v250
        %vm252 = vcmp.eq.s32.totalorder %v234, 1
        %v253 = vsel %vm252, %v237, %v235
        %v254 = vsel %vm252, %v250, %v247
        %v255 = vsub.f32 %v240, %v244
        %v256 = vmul.f32 %v255, 1.442695
        %v257 = vpow.pop %v256
        %v258 = vadd.f32 %v251, %v257
        %vm259 = vcmp.eq.s32.totalorder %v234, 2
        %v260 = vsel %vm259, %v240, %v253
        %v261 = vsel %vm259, %v257, %v254
        %v262 = vsub.f32 %v243, %v244
        %v263 = vmul.f32 %v262, 1.442695
        %v264 = vpow.pop %v263
        %v265 = vadd.f32 %v258, %v264
        %vm266 = vcmp.eq.s32.totalorder %v234, 3
        %v267 = vsel %vm266, %v243, %v260
        %v268 = vsel %vm266, %v264, %v261
        %v269 = vlog2.pop %v265
        %v270 = vmul.f32 %v269, 0.6931472
        %v271 = vsub.f32 %v267, %v244
        %v272 = vsub.f32 %v271, %v270
        %v273 = vrcp.pop %v265
        %v274 = vmul.f32 %v268, %v273
        %vm275 = vcmp.ne.s32.totalorder %v234, 0
        %v276 = vsel %vm275, 0.75, 0.25
        %v277 = vsub.f32 1.0, %v274
        %v278 = vmul.f32 %v277, %v277
        %v279 = vsub.f32 0.0, %v278
        %v280 = vmul.f32 %v272, %v276
        %v281 = vmul.f32 %v279, %v280
        %p282 = scmp.eq.s32.totalorder %s29, 0
        // Predicated region
        $region37: #{tpu_custom_call.1} parent=27 // pred_check
          %p283 = pneg %p282
        $region38: #{tpu_custom_call.1} parent=27 // pred_check_branch
          %285 = sbr.rel (%p283) target = $region40
        $region39: #{tpu_custom_call.1} parent=27 // pred_region
          %286 = vst [vmem:[%s231] sm:$0x3] %v281
        $region40: #{tpu_custom_call.1} parent=27 // pred_fallthru
          _
        %p287 = scmp.ne.s32.totalorder %s29, 0
        // Predicated region
        $region41: #{tpu_custom_call.1} parent=27 // pred_check
          %p288 = pneg %p287
        $region42: #{tpu_custom_call.1} parent=27 // pred_check_branch
          %290 = sbr.rel (%p288) target = $region44
        $region43: #{tpu_custom_call.1} parent=27 // pred_region
          %v291 = vld [vmem:[%s231] sm:$0x3]
          %v292 = vadd.f32 %v291, %v281
          %293 = vst [vmem:[%s231] sm:$0x3] %v292
        $region44: #{tpu_custom_call.1} parent=27 // pred_fallthru
          _
        %s294 = sand.u32 %s111, 1
        %s295 = scalar_lea.sflag [#allocation4], %s294
        %s296 = sand.u32 %s111, 1
        %s297 = smul.addr %s296, 2
        %s298 = scalar_lea.vmem [#allocation7], %s297
        // Predicated region
        $region45: #{tpu_custom_call.1} parent=27 // pred_check
          %p299 = pneg %p121
        $region46: #{tpu_custom_call.1} parent=27 // pred_check_branch
          %301 = sbr.rel (%p299) target = $region48
        $region47: #{tpu_custom_call.1} parent=27 // pred_region
          %s303 = ssub.s32 32, 32
          %304 = vsyncadd %s295, %s303
          %s305 = smul.addr %s27, 2
          %s306 = sadd.s32 %s28, %s305
          %s307 = smul.addr %s306, 32
          %s308 = scalar_lea.hbm %s2, %s307
          %s310 = sshll.u32 %s298, 4
          %s311 = int_to_ptr.vmem [resolvable:$true] %s310
          %313 = dma.vmem_to_hbm [thread:$0]  %s311, 32, %s308, %s295
        $region48: #{tpu_custom_call.1} parent=27 // pred_fallthru
          _
      $region28: #{tpu_custom_call.1} parent=5 // pred_fallthru
        _
      %p314 = scmp.le.s32.totalorder 2, %s17
      // Predicated region
      $region49: #{tpu_custom_call.1} parent=5 // pred_check
        %p315 = pneg %p314
      $region50: #{tpu_custom_call.1} parent=5 // pred_check_branch
        %317 = sbr.rel (%p315) target = $region52
      $region51: #{tpu_custom_call.1} parent=5 // pred_region
        %s318 = ssub.s32 %s17, 2
        // Predicated region
        $region53: #{tpu_custom_call.1} parent=51 // pred_check
          %p319 = pneg %p127
        $region54: #{tpu_custom_call.1} parent=51 // pred_check_branch
          %321 = sbr.rel (%p319) target = $region56
        $region55: #{tpu_custom_call.1} parent=51 // pred_region
          %s322 = sand.u32 %s112, 1
          %s323 = scalar_lea.sflag [#allocation4], %s322
          %s324 = sand.u32 %s112, 1
          %s325 = smul.addr %s324, 2
          %s326 = scalar_lea.vmem [#allocation7], %s325
          %327 = dma.done %s323, 32
        $region56: #{tpu_custom_call.1} parent=51 // pred_fallthru
          _
      $region52: #{tpu_custom_call.1} parent=5 // pred_fallthru
        _
    $region6: #{tpu_custom_call.1} parent=1 // loop_footer
      %s21 = sadd.s32 1, %s17
    $region7: #{tpu_custom_call.1} parent=1 // loop_footer_branch
      %16 = sbr.rel target = $region3
    $region8: #{tpu_custom_call.1} parent=1 // loop_exit
      _
    %328 = vsyncpa [#allocation3], 1
    %s329 = scalar_lea.sflag [#allocation3], 1
    %330 = vsyncpa %s329, 1
    %331 = vsyncpa [#allocation6], 1
    %s332 = scalar_lea.sflag [#allocation6], 1
    %333 = vsyncpa %s332, 1
    %334 = vsyncpa [#allocation4], 1
    %s335 = scalar_lea.sflag [#allocation4], 1
    %336 = vsyncpa %s335, 1

</llo_original>
